<compile_context>
chip_gen: v6e
topology: v6e:2x2x1
jax: 0.10.0
libtpu: 0.0.40
codegen_flags: <defaults>
</compile_context>

<pallas_src>
import math

import jax
import jax.numpy as jnp
from jax.experimental import pallas as pl
from jax.experimental.pallas import tpu as pltpu


# ---------------------------------------------------------------------------
# Pallas kernel: q_sample + synthetic net + squared-error partial reduction
# ---------------------------------------------------------------------------
def _bbdm_loss_kernel(ms_ref, x_ref, y_ref, n_ref, w_ref, b_ref, wc_ref, out_ref):
    # ms_ref : SMEM (2, B) scalar-prefetch  [row 0 = m_t, row 1 = sigma_t]
    # x/y/n  : VMEM (1, C, HW) blocks (one batch item per grid step)
    # w      : VMEM (C, C)   channel-mix weight of the synthetic net
    # b      : VMEM (C, 1)   bias
    # wc     : VMEM (C, 1)   m_t conditioning vector
    # out    : VMEM (1, 1, 128) lane-dense per-batch partial sum of sq. error
    b = pl.program_id(0)
    m = ms_ref[0, b]          # scalar f32 from SMEM
    s = ms_ref[1, b]

    x = x_ref[0]              # (C, HW) f32
    y = y_ref[0]
    noise = n_ref[0]

    # ---- q_sample (fused, scalar-broadcast on the VPU) ----------------------
    x_t = (1.0 - m) * x + m * y + s * noise
    objective = m * (y - x) + s * noise

    # ---- synthetic net(x_t, m_t): one MXU matmul + VPU conditioning + tanh --
    # TODO(synk): the reference `self.net` is an arbitrary external module
    # (typically a UNet); a deterministic channel-mix + m_t-conditioned tanh
    # stand-in is used, so only the loss structure (not values) is comparable.
    v = jnp.dot(
        w_ref[...].astype(jnp.bfloat16),
        x_t.astype(jnp.bfloat16),
        preferred_element_type=jnp.float32,
    )                                                   # (C, HW) f32
    v_pred = jnp.tanh(v + b_ref[...] + m * wc_ref[...])  # elementwise stays f32

    # ---- squared error, reduced to a lane-dense (1, 128) partial sum --------
    diff = v_pred - objective
    sq = diff * diff                                    # (C, HW)
    hw = sq.shape[1]
    col = jnp.sum(sq, axis=0, keepdims=True)            # (1, HW) sublane reduce
    acc = jnp.zeros((1, 128), jnp.float32)
    for k in range(hw // 128):                          # fold lanes, stay 128-wide
        acc = acc + col[:, k * 128:(k + 1) * 128]
    out_ref[0] = acc


@jax.jit
def bbdm_forward_loss(x, y, noise, m_t, sigma_t, w, bias, w_cond):
    """Fused q_sample + net + MSE. x/y/noise: (B, C, H, W); m_t/sigma_t: (B,)."""
    B, C, H, W = x.shape
    HW = H * W
    assert HW % 128 == 0, "flattened spatial dim must be a multiple of 128"

    x2 = x.reshape(B, C, HW).astype(jnp.float32)
    y2 = y.reshape(B, C, HW).astype(jnp.float32)
    n2 = noise.reshape(B, C, HW).astype(jnp.float32)
    ms = jnp.stack([m_t, sigma_t], axis=0).astype(jnp.float32)   # (2, B) -> SMEM

    partial = pl.pallas_call(
        _bbdm_loss_kernel,
        out_shape=jax.ShapeDtypeStruct((B, 1, 128), jnp.float32),
        grid_spec=pltpu.PrefetchScalarGridSpec(
            num_scalar_prefetch=1,
            grid=(B,),
            in_specs=[
                pl.BlockSpec((1, C, HW), lambda b, ms: (b, 0, 0)),
                pl.BlockSpec((1, C, HW), lambda b, ms: (b, 0, 0)),
                pl.BlockSpec((1, C, HW), lambda b, ms: (b, 0, 0)),
                pl.BlockSpec((C, C), lambda b, ms: (0, 0)),
                pl.BlockSpec((C, 1), lambda b, ms: (0, 0)),
                pl.BlockSpec((C, 1), lambda b, ms: (0, 0)),
            ],
            out_specs=pl.BlockSpec((1, 1, 128), lambda b, ms: (b, 0, 0)),
        ),
        compiler_params=pltpu.CompilerParams(
            dimension_semantics=("parallel",),
        ),
    )(ms, x2, y2, n2, w, bias, w_cond)

    # F.mse_loss default reduction = mean over all elements.
    return jnp.sum(partial) / jnp.float32(B * C * HW)


# ---------------------------------------------------------------------------
# BBDMDiffusion (glue in plain JAX; the per-element compute runs in the kernel)
# ---------------------------------------------------------------------------
class BBDMDiffusionPallas:
    def __init__(self, in_channels: int, key):
        self.training_num_steps = 1000
        self.m_min, self.m_max = 0.001, 0.999
        # Deterministic synthetic net parameters (channel mix + m_t conditioning).
        k1, k2, k3 = jax.random.split(key, 3)
        scale = 1.0 / math.sqrt(in_channels)
        self.w = jax.random.normal(k1, (in_channels, in_channels), jnp.float32) * scale
        self.bias = jax.random.normal(k2, (in_channels, 1), jnp.float32) * scale
        self.w_cond = jax.random.normal(k3, (in_channels, 1), jnp.float32) * scale

    def _schedule_coeffs(self, t):
        # LinearSchedule(0.001, 0.999) over training_num_steps, as in q_sample.
        mean_t = jnp.linspace(self.m_min, self.m_max, self.training_num_steps,
                              dtype=jnp.float32)
        variance_t = 2.0 * (mean_t - mean_t ** 2) * 1.0
        m_t = mean_t[t]
        sigma_t = jnp.sqrt(variance_t[t])
        return m_t, sigma_t

    def forward(self, x, target_condition, key):
        B = x.shape[0]
        k_t, k_noise = jax.random.split(key)
        t = jax.random.randint(k_t, (B,), 0, self.training_num_steps)
        noise = jax.random.normal(k_noise, x.shape, jnp.float32)
        m_t, sigma_t = self._schedule_coeffs(t)
        return bbdm_forward_loss(x, target_condition, noise, m_t, sigma_t,
                                 self.w, self.bias, self.w_cond)


if __name__ == "__main__":
    key = jax.random.PRNGKey(0)
    k_params, k_x, k_y, k_fwd = jax.random.split(key, 4)

    B, C, H, W = 2, 4, 16, 16          # H*W = 256 -> lane dim is 2 x 128
    module = BBDMDiffusionPallas(C, k_params)

    x = jax.random.normal(k_x, (B, C, H, W), jnp.float32)
    target_condition = jax.random.normal(k_y, (B, C, H, W), jnp.float32)

    loss = module.forward(x, target_condition, k_fwd)
    loss = jax.block_until_ready(loss)

    assert loss.shape == (), loss.shape
    assert bool(jnp.isfinite(loss)), loss
    print("KERNEL_OK")
</pallas_src>

<mosaic_0001>
module attributes {stable_mosaic.version = 11 : i64} {
  func.func @_bbdm_loss_kernel(%arg0: i32, %arg1: memref<2x2xf32, #tpu.memory_space<smem>>, %arg2: memref<1x4x256xf32, #tpu.memory_space<vmem>>, %arg3: memref<1x4x256xf32, #tpu.memory_space<vmem>>, %arg4: memref<1x4x256xf32, #tpu.memory_space<vmem>>, %arg5: memref<4x4xf32, #tpu.memory_space<vmem>>, %arg6: memref<4x1xf32, #tpu.memory_space<vmem>>, %arg7: memref<4x1xf32, #tpu.memory_space<vmem>>, %arg8: memref<1x1x128xf32, #tpu.memory_space<vmem>>) attributes {dimension_semantics = [#tpu.dimension_semantics<parallel>], iteration_bounds = array<i64: 2>, scalar_prefetch = 1 : i64, scratch_operands = 0 : i64, tpu.core_type = #tpu.core_type<tc>, window_params = [{transform_indices = @transform_0, window_bounds = array<i64: 1, 4, 256>}, {transform_indices = @transform_1, window_bounds = array<i64: 1, 4, 256>}, {transform_indices = @transform_2, window_bounds = array<i64: 1, 4, 256>}, {pipeline_mode = #tpu.pipeline_mode<synchronous>, transform_indices = @transform_3, window_bounds = array<i64: 4, 4>}, {pipeline_mode = #tpu.pipeline_mode<synchronous>, transform_indices = @transform_4, window_bounds = array<i64: 4, 1>}, {pipeline_mode = #tpu.pipeline_mode<synchronous>, transform_indices = @transform_5, window_bounds = array<i64: 4, 1>}, {transform_indices = @transform_6, window_bounds = array<i64: 1, 1, 128>}]} {
    %c0 = arith.constant 0 : index
    %0 = arith.index_cast %arg0 : i32 to index
    %1 = memref.load %arg1[%c0, %0] : memref<2x2xf32, #tpu.memory_space<smem>>
    %c1 = arith.constant 1 : index
    %2 = arith.index_cast %arg0 : i32 to index
    %3 = memref.load %arg1[%c1, %2] : memref<2x2xf32, #tpu.memory_space<smem>>
    %c0_0 = arith.constant 0 : index
    %c0_1 = arith.constant 0 : index
    %c0_2 = arith.constant 0 : index
    %4 = vector.load %arg2[%c0_0, %c0_1, %c0_2] : memref<1x4x256xf32, #tpu.memory_space<vmem>>, vector<1x4x256xf32>
    %5 = vector.shape_cast %4 : vector<1x4x256xf32> to vector<4x256xf32>
    %c0_3 = arith.constant 0 : index
    %c0_4 = arith.constant 0 : index
    %c0_5 = arith.constant 0 : index
    %6 = vector.load %arg3[%c0_3, %c0_4, %c0_5] : memref<1x4x256xf32, #tpu.memory_space<vmem>>, vector<1x4x256xf32>
    %7 = vector.shape_cast %6 : vector<1x4x256xf32> to vector<4x256xf32>
    %c0_6 = arith.constant 0 : index
    %c0_7 = arith.constant 0 : index
    %c0_8 = arith.constant 0 : index
    %8 = vector.load %arg4[%c0_6, %c0_7, %c0_8] : memref<1x4x256xf32, #tpu.memory_space<vmem>>, vector<1x4x256xf32>
    %9 = vector.shape_cast %8 : vector<1x4x256xf32> to vector<4x256xf32>
    %cst = arith.constant 1.000000e+00 : f32
    %10 = arith.subf %cst, %1 : f32
    %11 = vector.broadcast %10 : f32 to vector<4x256xf32>
    %12 = arith.mulf %11, %5 : vector<4x256xf32>
    %13 = vector.broadcast %1 : f32 to vector<4x256xf32>
    %14 = arith.mulf %13, %7 : vector<4x256xf32>
    %15 = arith.addf %12, %14 : vector<4x256xf32>
    %16 = vector.broadcast %3 : f32 to vector<4x256xf32>
    %17 = arith.mulf %16, %9 : vector<4x256xf32>
    %18 = arith.addf %15, %17 : vector<4x256xf32>
    %19 = arith.subf %7, %5 : vector<4x256xf32>
    %20 = vector.broadcast %1 : f32 to vector<4x256xf32>
    %21 = arith.mulf %20, %19 : vector<4x256xf32>
    %22 = vector.broadcast %3 : f32 to vector<4x256xf32>
    %23 = arith.mulf %22, %9 : vector<4x256xf32>
    %24 = arith.addf %21, %23 : vector<4x256xf32>
    %c0_9 = arith.constant 0 : index
    %c0_10 = arith.constant 0 : index
    %25 = vector.load %arg5[%c0_9, %c0_10] : memref<4x4xf32, #tpu.memory_space<vmem>>, vector<4x4xf32>
    %26 = arith.truncf %25 : vector<4x4xf32> to vector<4x4xbf16>
    %27 = arith.truncf %18 : vector<4x256xf32> to vector<4x256xbf16>
    %cst_11 = arith.constant dense<0.000000e+00> : vector<4x256xf32>
    %28 = tpu.matmul %26, %27, %cst_11 {dimension_numbers = #tpu.dot_dimension_numbers<[1], [0], [0], [1], [0, 0, 1, 1], [], []>} : vector<4x4xbf16>, vector<4x256xbf16>, vector<4x256xf32> -> vector<4x256xf32>
    %c0_12 = arith.constant 0 : index
    %c0_13 = arith.constant 0 : index
    %29 = vector.load %arg6[%c0_12, %c0_13] : memref<4x1xf32, #tpu.memory_space<vmem>>, vector<4x1xf32>
    %30 = vector.broadcast %29 : vector<4x1xf32> to vector<4x256xf32>
    %31 = arith.addf %28, %30 : vector<4x256xf32>
    %c0_14 = arith.constant 0 : index
    %c0_15 = arith.constant 0 : index
    %32 = vector.load %arg7[%c0_14, %c0_15] : memref<4x1xf32, #tpu.memory_space<vmem>>, vector<4x1xf32>
    %33 = vector.broadcast %1 : f32 to vector<4x1xf32>
    %34 = arith.mulf %33, %32 : vector<4x1xf32>
    %35 = vector.broadcast %34 : vector<4x1xf32> to vector<4x256xf32>
    %36 = arith.addf %31, %35 : vector<4x256xf32>
    %37 = math.tanh %36 : vector<4x256xf32>
    %38 = arith.subf %37, %24 : vector<4x256xf32>
    %39 = arith.mulf %38, %38 : vector<4x256xf32>
    %cst_16 = arith.constant dense<0.000000e+00> : vector<256xf32>
    %40 = vector.multi_reduction <add>, %39, %cst_16 [0] : vector<4x256xf32> to vector<256xf32>
    %41 = vector.shape_cast %40 : vector<256xf32> to vector<1x256xf32>
    %cst_17 = arith.constant 0.000000e+00 : f32
    %42 = vector.broadcast %cst_17 : f32 to vector<1x128xf32>
    %43 = vector.extract_strided_slice %41 {offsets = [0, 0], sizes = [1, 128], strides = [1, 1]} : vector<1x256xf32> to vector<1x128xf32>
    %44 = arith.addf %42, %43 : vector<1x128xf32>
    %45 = vector.extract_strided_slice %41 {offsets = [0, 128], sizes = [1, 128], strides = [1, 1]} : vector<1x256xf32> to vector<1x128xf32>
    %46 = arith.addf %44, %45 : vector<1x128xf32>
    %c0_18 = arith.constant 0 : index
    %c0_19 = arith.constant 0 : index
    %c0_20 = arith.constant 0 : index
    %47 = vector.load %arg8[%c0_18, %c0_19, %c0_20] : memref<1x1x128xf32, #tpu.memory_space<vmem>>, vector<1x1x128xf32>
    %48 = vector.shape_cast %47 : vector<1x1x128xf32> to vector<1x128xf32>
    %49 = vector.shape_cast %46 : vector<1x128xf32> to vector<1x1x128xf32>
    tpu.vector_store %arg8[%c0_18, %c0_19, %c0_20], %49 {strides = array<i32>} : memref<1x1x128xf32, #tpu.memory_space<vmem>>, vector<1x1x128xf32>,
    return
  }
  func.func @transform_0(%arg0: i32, %arg1: memref<2x2xf32, #tpu.memory_space<smem>>) -> (i32, i32, i32) {
    %c0_i32 = arith.constant 0 : i32
    %c0_i32_0 = arith.constant 0 : i32
    %c0_i32_1 = arith.constant 0 : i32
    return %arg0, %c0_i32, %c0_i32_0 : i32, i32, i32
  }
  func.func @transform_1(%arg0: i32, %arg1: memref<2x2xf32, #tpu.memory_space<smem>>) -> (i32, i32, i32) {
    %c0_i32 = arith.constant 0 : i32
    %c0_i32_0 = arith.constant 0 : i32
    %c0_i32_1 = arith.constant 0 : i32
    return %arg0, %c0_i32, %c0_i32_0 : i32, i32, i32
  }
  func.func @transform_2(%arg0: i32, %arg1: memref<2x2xf32, #tpu.memory_space<smem>>) -> (i32, i32, i32) {
    %c0_i32 = arith.constant 0 : i32
    %c0_i32_0 = arith.constant 0 : i32
    %c0_i32_1 = arith.constant 0 : i32
    return %arg0, %c0_i32, %c0_i32_0 : i32, i32, i32
  }
  func.func @transform_3(%arg0: i32, %arg1: memref<2x2xf32, #tpu.memory_space<smem>>) -> (i32, i32) {
    %c0_i32 = arith.constant 0 : i32
    %c0_i32_0 = arith.constant 0 : i32
    %c0_i32_1 = arith.constant 0 : i32
    return %c0_i32, %c0_i32_0 : i32, i32
  }
  func.func @transform_4(%arg0: i32, %arg1: memref<2x2xf32, #tpu.memory_space<smem>>) -> (i32, i32) {
    %c0_i32 = arith.constant 0 : i32
    %c0_i32_0 = arith.constant 0 : i32
    %c0_i32_1 = arith.constant 0 : i32
    return %c0_i32, %c0_i32_0 : i32, i32
  }
  func.func @transform_5(%arg0: i32, %arg1: memref<2x2xf32, #tpu.memory_space<smem>>) -> (i32, i32) {
    %c0_i32 = arith.constant 0 : i32
    %c0_i32_0 = arith.constant 0 : i32
    %c0_i32_1 = arith.constant 0 : i32
    return %c0_i32, %c0_i32_0 : i32, i32
  }
  func.func @transform_6(%arg0: i32, %arg1: memref<2x2xf32, #tpu.memory_space<smem>>) -> (i32, i32, i32) {
    %c0_i32 = arith.constant 0 : i32
    %c0_i32_0 = arith.constant 0 : i32
    %c0_i32_1 = arith.constant 0 : i32
    return %arg0, %c0_i32, %c0_i32_0 : i32, i32, i32
  }
}

</mosaic_0001>

<llo_original>
// kernel: bbdm_forward_loss.1
$region0: #{bbdm_forward_loss.1}
  #allocation0 [shape = 'u32[]', space=smem, size = 0x4, offset = 0x4, fixed_abs, tag = 'smem constant byte address 0x4 - core index']
  #allocation1 [shape = 'u32[144,128]{1,0:T(1,128)}', space=vmem, size = 0x12000, scoped, tag = 'internal scratch']
  #allocation2 [shape = 's32[1]{0}', space=sflag, size = 0x4, scoped, tag = 'scoped memory for bbdm_forward_loss.1']
  #allocation3 [shape = 'u8[1024]{0}', space=smem, size = 0x400, scoped, tag = 'prefetched SMEM operand 0']
  %s0 = inlined_call_operand.vmem [shape: f32[2,2], index: 0, kind: input, shape index: {}]
  %s1 = inlined_call_operand.vmem [shape: f32[2,4,256], index: 1, kind: input, shape index: {}]
  %s2 = inlined_call_operand.vmem [shape: f32[2,4,256], index: 2, kind: input, shape index: {}]
  %s3 = inlined_call_operand.vmem [shape: f32[2,4,256], index: 3, kind: input, shape index: {}]
  %s4 = inlined_call_operand.vmem [shape: f32[4,4], index: 4, kind: input, shape index: {}]
  %s5 = inlined_call_operand.vmem [shape: f32[4,1], index: 5, kind: input, shape index: {}]
  %s6 = inlined_call_operand.vmem [shape: f32[4,1], index: 6, kind: input, shape index: {}]
  %s7 = inlined_call_operand.vmem [shape: f32[2,1,128], index: 7, kind: output, shape index: {}]
  %s8 = sld [smem:[#allocation0]]
  $region57: #{bbdm_forward_loss.1} parent=0
    _
  %s10 = ssub.s32 1, %s8
  %s11 = scalar_select 0, %s10, %s8
  %s12 = sshll.u32 %s0, 4
  %s13 = int_to_ptr.vmem [resolvable:$true] %s12
  %15 = dma.vmem_to_smem %s13, 32, [#allocation3], [#allocation2]
  %16 = dma.done [#allocation2], 32
  %17 = sfence
  loop: start=0, step=1, limit=4
  $region2: #{bbdm_forward_loss.1} parent=0 // loop_pre_header
    _
  $region3: #{bbdm_forward_loss.1} parent=0 // loop_header
    %s19 = sphi 0, %s23
    %p20 = scmp.ge.s32.totalorder %s19, 4
    %s29 = sphi 0, %s31
    %s32 = sphi 0, %s29
    %s33 = sphi 0, %s32
    %s49 = sphi 0, %s33
    %s55 = sphi 0, %s57
    %s58 = sphi 0, %s55
    %s59 = sphi 0, %s58
    %s75 = sphi 0, %s59
    %s81 = sphi 0, %s83
    %s84 = sphi 0, %s81
    %s85 = sphi 0, %s84
    %s101 = sphi 0, %s85
    %s105 = sphi 0, %s105
    %s107 = sphi 0, %s105
    %s108 = sphi 0, %s107
    %s122 = sphi 0, %s108
    %s126 = sphi 0, %s126
    %s128 = sphi 0, %s126
    %s129 = sphi 0, %s128
    %s143 = sphi 0, %s129
    %s147 = sphi 0, %s147
    %s149 = sphi 0, %s147
    %s150 = sphi 0, %s149
    %s164 = sphi 0, %s150
    %s170 = sphi 0, %s172
    %s173 = sphi 0, %s170
    %s174 = sphi 0, %s173
    %s190 = sphi 0, %s174
  $region4: #{bbdm_forward_loss.1} parent=0 // loop_header_branch
    %22 = sbr.rel (%p20) target = $region8
  $region5: #{bbdm_forward_loss.1} parent=0 // loop_body
    %s24 = ssub.s32 %s19, 1
    %s25 = ssub.s32 %s19, 2
    %s26 = sadd.s32 %s19, 1
    %s27 = ssub.s32 %s19, %s26
    %p28 = scmp.eq.s32.totalorder %s27, 0
    %s30 = sadd.s32 %s29, 1
    %s31 = scalar_select %p28, %s29, %s30
    %p34 = pneg %p28
    %p35 = scmp.eq.s32.totalorder %s19, 1
    %p36 = por %p34, %p35
    %p37 = scmp.ne.s32.totalorder %s29, %s32
    %p38 = scmp.eq.s32.totalorder %s19, 0
    %p39 = por %p37, %p38
    %p40 = scmp.ne.s32.totalorder %s29, %s32
    %p41 = scmp.eq.s32.totalorder %s24, 1
    %p42 = por %p40, %p41
    %p43 = scmp.ne.s32.totalorder %s32, %s33
    %p44 = scmp.eq.s32.totalorder %s24, 0
    %p45 = por %p43, %p44
    %p46 = scmp.ne.s32.totalorder %s32, %s33
    %p47 = scmp.eq.s32.totalorder %s25, 1
    %p48 = por %p46, %p47
    %p50 = scmp.ne.s32.totalorder %s33, %s49
    %p51 = scmp.eq.s32.totalorder %s25, 0
    %p52 = por %p50, %p51
    %s53 = ssub.s32 %s19, %s26
    %p54 = scmp.eq.s32.totalorder %s53, 0
    %s56 = sadd.s32 %s55, 1
    %s57 = scalar_select %p54, %s55, %s56
    %p60 = pneg %p54
    %p61 = scmp.eq.s32.totalorder %s19, 1
    %p62 = por %p60, %p61
    %p63 = scmp.ne.s32.totalorder %s55, %s58
    %p64 = scmp.eq.s32.totalorder %s19, 0
    %p65 = por %p63, %p64
    %p66 = scmp.ne.s32.totalorder %s55, %s58
    %p67 = scmp.eq.s32.totalorder %s24, 1
    %p68 = por %p66, %p67
    %p69 = scmp.ne.s32.totalorder %s58, %s59
    %p70 = scmp.eq.s32.totalorder %s24, 0
    %p71 = por %p69, %p70
    %p72 = scmp.ne.s32.totalorder %s58, %s59
    %p73 = scmp.eq.s32.totalorder %s25, 1
    %p74 = por %p72, %p73
    %p76 = scmp.ne.s32.totalorder %s59, %s75
    %p77 = scmp.eq.s32.totalorder %s25, 0
    %p78 = por %p76, %p77
    %s79 = ssub.s32 %s19, %s26
    %p80 = scmp.eq.s32.totalorder %s79, 0
    %s82 = sadd.s32 %s81, 1
    %s83 = scalar_select %p80, %s81, %s82
    %p86 = pneg %p80
    %p87 = scmp.eq.s32.totalorder %s19, 1
    %p88 = por %p86, %p87
    %p89 = scmp.ne.s32.totalorder %s81, %s84
    %p90 = scmp.eq.s32.totalorder %s19, 0
    %p91 = por %p89, %p90
    %p92 = scmp.ne.s32.totalorder %s81, %s84
    %p93 = scmp.eq.s32.totalorder %s24, 1
    %p94 = por %p92, %p93
    %p95 = scmp.ne.s32.totalorder %s84, %s85
    %p96 = scmp.eq.s32.totalorder %s24, 0
    %p97 = por %p95, %p96
    %p98 = scmp.ne.s32.totalorder %s84, %s85
    %p99 = scmp.eq.s32.totalorder %s25, 1
    %p100 = por %p98, %p99
    %p102 = scmp.ne.s32.totalorder %s85, %s101
    %p103 = scmp.eq.s32.totalorder %s25, 0
    %p104 = por %p102, %p103
    %s106 = sadd.s32 %s105, 1
    %p109 = scmp.eq.s32.totalorder %s19, 1
    %p110 = scmp.ne.s32.totalorder %s105, %s107
    %p111 = scmp.eq.s32.totalorder %s19, 0
    %p112 = por %p110, %p111
    %p113 = scmp.ne.s32.totalorder %s105, %s107
    %p114 = scmp.eq.s32.totalorder %s24, 1
    %p115 = por %p113, %p114
    %p116 = scmp.ne.s32.totalorder %s107, %s108
    %p117 = scmp.eq.s32.totalorder %s24, 0
    %p118 = por %p116, %p117
    %p119 = scmp.ne.s32.totalorder %s107, %s108
    %p120 = scmp.eq.s32.totalorder %s25, 1
    %p121 = por %p119, %p120
    %p123 = scmp.ne.s32.totalorder %s108, %s122
    %p124 = scmp.eq.s32.totalorder %s25, 0
    %p125 = por %p123, %p124
    %s127 = sadd.s32 %s126, 1
    %p130 = scmp.eq.s32.totalorder %s19, 1
    %p131 = scmp.ne.s32.totalorder %s126, %s128
    %p132 = scmp.eq.s32.totalorder %s19, 0
    %p133 = por %p131, %p132
    %p134 = scmp.ne.s32.totalorder %s126, %s128
    %p135 = scmp.eq.s32.totalorder %s24, 1
    %p136 = por %p134, %p135
    %p137 = scmp.ne.s32.totalorder %s128, %s129
    %p138 = scmp.eq.s32.totalorder %s24, 0
    %p139 = por %p137, %p138
    %p140 = scmp.ne.s32.totalorder %s128, %s129
    %p141 = scmp.eq.s32.totalorder %s25, 1
    %p142 = por %p140, %p141
    %p144 = scmp.ne.s32.totalorder %s129, %s143
    %p145 = scmp.eq.s32.totalorder %s25, 0
    %p146 = por %p144, %p145
    %s148 = sadd.s32 %s147, 1
    %p151 = scmp.eq.s32.totalorder %s19, 1
    %p152 = scmp.ne.s32.totalorder %s147, %s149
    %p153 = scmp.eq.s32.totalorder %s19, 0
    %p154 = por %p152, %p153
    %p155 = scmp.ne.s32.totalorder %s147, %s149
    %p156 = scmp.eq.s32.totalorder %s24, 1
    %p157 = por %p155, %p156
    %p158 = scmp.ne.s32.totalorder %s149, %s150
    %p159 = scmp.eq.s32.totalorder %s24, 0
    %p160 = por %p158, %p159
    %p161 = scmp.ne.s32.totalorder %s149, %s150
    %p162 = scmp.eq.s32.totalorder %s25, 1
    %p163 = por %p161, %p162
    %p165 = scmp.ne.s32.totalorder %s150, %s164
    %p166 = scmp.eq.s32.totalorder %s25, 0
    %p167 = por %p165, %p166
    %s168 = ssub.s32 %s19, %s26
    %p169 = scmp.eq.s32.totalorder %s168, 0
    %s171 = sadd.s32 %s170, 1
    %s172 = scalar_select %p169, %s170, %s171
    %p175 = pneg %p169
    %p176 = scmp.eq.s32.totalorder %s19, 1
    %p177 = por %p175, %p176
    %p178 = scmp.ne.s32.totalorder %s170, %s173
    %p179 = scmp.eq.s32.totalorder %s19, 0
    %p180 = por %p178, %p179
    %p181 = scmp.ne.s32.totalorder %s170, %s173
    %p182 = scmp.eq.s32.totalorder %s24, 1
    %p183 = por %p181, %p182
    %p184 = scmp.ne.s32.totalorder %s173, %s174
    %p185 = scmp.eq.s32.totalorder %s24, 0
    %p186 = por %p184, %p185
    %p187 = scmp.ne.s32.totalorder %s173, %s174
    %p188 = scmp.eq.s32.totalorder %s25, 1
    %p189 = por %p187, %p188
    %p191 = scmp.ne.s32.totalorder %s174, %s190
    %p192 = scmp.eq.s32.totalorder %s25, 0
    %p193 = por %p191, %p192
    %p194 = scmp.le.s32.totalorder 1, %s19
    %p195 = scmp.lt.s32.totalorder %s19, 3
    %p196 = pnand %p194, %p195
    %p197 = pneg %p196
    // Predicated region
    $region9: #{bbdm_forward_loss.1} parent=5 // pred_check
      _
    $region10: #{bbdm_forward_loss.1} parent=5 // pred_check_branch
      %199 = sbr.rel (%p196) target = $region12
    $region11: #{bbdm_forward_loss.1} parent=5 // pred_region
      %s200 = ssub.s32 %s19, 1
      // Predicated region
      $region13: #{bbdm_forward_loss.1} parent=11 // pred_check
        %p201 = pneg %p118
      $region14: #{bbdm_forward_loss.1} parent=11 // pred_check_branch
        %203 = sbr.rel (%p201) target = $region16
      $region15: #{bbdm_forward_loss.1} parent=11 // pred_region
        _
      $region16: #{bbdm_forward_loss.1} parent=11 // pred_fallthru
        _
      // Predicated region
      $region17: #{bbdm_forward_loss.1} parent=11 // pred_check
        %p204 = pneg %p139
      $region18: #{bbdm_forward_loss.1} parent=11 // pred_check_branch
        %206 = sbr.rel (%p204) target = $region20
      $region19: #{bbdm_forward_loss.1} parent=11 // pred_region
        _
      $region20: #{bbdm_forward_loss.1} parent=11 // pred_fallthru
        _
      // Predicated region
      $region21: #{bbdm_forward_loss.1} parent=11 // pred_check
        %p207 = pneg %p160
      $region22: #{bbdm_forward_loss.1} parent=11 // pred_check_branch
        %209 = sbr.rel (%p207) target = $region24
      $region23: #{bbdm_forward_loss.1} parent=11 // pred_region
        _
      $region24: #{bbdm_forward_loss.1} parent=11 // pred_fallthru
        _
    $region12: #{bbdm_forward_loss.1} parent=5 // pred_fallthru
      _
    %p210 = scmp.lt.s32.totalorder %s19, 2
    // Predicated region
    $region25: #{bbdm_forward_loss.1} parent=5 // pred_check
      %p211 = pneg %p210
    $region26: #{bbdm_forward_loss.1} parent=5 // pred_check_branch
      %213 = sbr.rel (%p211) target = $region28
    $region27: #{bbdm_forward_loss.1} parent=5 // pred_region
      // Predicated region
      $region29: #{bbdm_forward_loss.1} parent=27 // pred_check
        %p214 = pneg %p39
      $region30: #{bbdm_forward_loss.1} parent=27 // pred_check_branch
        %216 = sbr.rel (%p214) target = $region32
      $region31: #{bbdm_forward_loss.1} parent=27 // pred_region
        %p217 = scmp.lt.s32.totalorder %s19, 1
        %s218 = scalar_select %p217, %s19, 1
        %s219 = smul.addr %s218, 2
        %s220 = smul.addr %s219, 4
        %s221 = scalar_lea.vmem %s1, %s220
      $region32: #{bbdm_forward_loss.1} parent=27 // pred_fallthru
        _
      // Predicated region
      $region33: #{bbdm_forward_loss.1} parent=27 // pred_check
        %p222 = pneg %p65
      $region34: #{bbdm_forward_loss.1} parent=27 // pred_check_branch
        %224 = sbr.rel (%p222) target = $region36
      $region35: #{bbdm_forward_loss.1} parent=27 // pred_region
        %p225 = scmp.lt.s32.totalorder %s19, 1
        %s226 = scalar_select %p225, %s19, 1
        %s227 = smul.addr %s226, 2
        %s228 = smul.addr %s227, 4
        %s229 = scalar_lea.vmem %s2, %s228
      $region36: #{bbdm_forward_loss.1} parent=27 // pred_fallthru
        _
      // Predicated region
      $region37: #{bbdm_forward_loss.1} parent=27 // pred_check
        %p230 = pneg %p91
      $region38: #{bbdm_forward_loss.1} parent=27 // pred_check_branch
        %232 = sbr.rel (%p230) target = $region40
      $region39: #{bbdm_forward_loss.1} parent=27 // pred_region
        %p233 = scmp.lt.s32.totalorder %s19, 1
        %s234 = scalar_select %p233, %s19, 1
        %s235 = smul.addr %s234, 2
        %s236 = smul.addr %s235, 4
        %s237 = scalar_lea.vmem %s3, %s236
      $region40: #{bbdm_forward_loss.1} parent=27 // pred_fallthru
        _
    $region28: #{bbdm_forward_loss.1} parent=5 // pred_fallthru
      _
    %p238 = scmp.le.s32.totalorder 1, %s19
    %p239 = scmp.lt.s32.totalorder %s19, 3
    %p240 = pnand %p238, %p239
    %p241 = pneg %p240
    // Predicated region
    $region41: #{bbdm_forward_loss.1} parent=5 // pred_check
      _
    $region42: #{bbdm_forward_loss.1} parent=5 // pred_check_branch
      %243 = sbr.rel (%p240) target = $region44
    $region43: #{bbdm_forward_loss.1} parent=5 // pred_region
      %s244 = ssub.s32 %s19, 1
      %p245 = scmp.lt.s32.totalorder %s24, 1
      %s246 = scalar_select %p245, %s24, 1
      %s247 = smul.addr %s246, 2
      %s248 = smul.addr %s247, 4
      %s249 = scalar_lea.vmem %s1, %s248
      %p250 = pneg %p45
      %p251 = pneg %p42
      %p252 = scmp.lt.s32.totalorder %s24, 1
      %s253 = scalar_select %p252, %s24, 1
      %s254 = smul.addr %s253, 2
      %s255 = smul.addr %s254, 4
      %s256 = scalar_lea.vmem %s2, %s255
      %p257 = pneg %p71
      %p258 = pneg %p68
      %p259 = scmp.lt.s32.totalorder %s24, 1
      %s260 = scalar_select %p259, %s24, 1
      %s261 = smul.addr %s260, 2
      %s262 = smul.addr %s261, 4
      %s263 = scalar_lea.vmem %s3, %s262
      %p264 = pneg %p97
      %p265 = pneg %p94
      %p266 = pneg %p118
      %p267 = pneg %p115
      %p268 = pneg %p139
      %p269 = pneg %p136
      %p270 = pneg %p160
      %p271 = pneg %p157
      %p272 = pneg %p186
      %p273 = pneg %p183
      %p274 = scmp.lt.s32.totalorder %s24, 1
      %s275 = scalar_select %p274, %s24, 1
      %s276 = scalar_lea.vmem %s7, %s275
      %p277 = scmp.lt.s32.totalorder %s24, 1
      %s278 = scalar_select %p277, %s24, 1
      %s279 = smul.addr %s278, 2
      %s280 = smul.addr %s279, 4
      %s281 = scalar_lea.vmem %s1, %s280
      %p282 = scmp.lt.s32.totalorder %s24, 1
      %s283 = scalar_select %p282, %s24, 1
      %s284 = smul.addr %s283, 2
      %s285 = smul.addr %s284, 4
      %s286 = scalar_lea.vmem %s2, %s285
      %p287 = scmp.lt.s32.totalorder %s24, 1
      %s288 = scalar_select %p287, %s24, 1
      %s289 = smul.addr %s288, 2
      %s290 = smul.addr %s289, 4
      %s291 = scalar_lea.vmem %s3, %s290
      %p292 = scmp.lt.s32.totalorder %s24, 1
      %s293 = scalar_select %p292, %s24, 1
      %s294 = scalar_lea.vmem %s7, %s293
      %s296 = sld [smem:[#allocation3 + %s24]]
      %s297 = sshra.s32 %s24, 7
      %s298 = sand.u32 %s24, 127
      %s299 = sadd.s32 %s297, 1
      %s300 = smul.u32 %s299, 128
      %s301 = sshra.s32 %s24, 7
      %s302 = sand.u32 %s24, 127
      %s303 = sadd.s32 %s300, %s302
      %s304 = sld [smem:[#allocation3 + %s303]]
      %v305 = vld [vmem:[%s281] sm:$0xff]
      %v306 = vld [vmem:[%s286] sm:$0xff]
      %v307 = vld [vmem:[%s291] sm:$0xff]
      %s308 = ssub.f32 1.0, %s296
      %v309 = vstv %s308
      %v310 = vmul.f32 %v309, %v305
      %v311 = vstv %s296
      %v312 = vmul.f32 %v311, %v306
      %v313 = vadd.f32 %v310, %v312
      %v314 = vstv %s304
      %v315 = vmul.f32 %v314, %v307
      %v316 = vadd.f32 %v313, %v315
      %v317 = vsub.f32 %v306, %v305
      %v318 = vmul.f32 %v311, %v317
      %v319 = vadd.f32 %v318, %v315
      %v320 = vld [vmem:[%s4] sm:$0xf]
      %v321 = vpack.c.bf16 %v320, %v320
      %v323 = vcombine.high %v316, %v316
      %v325 = vpack.c.bf16 %v316, %v316
      %v326 = vpack.c.bf16 %v323, %v323
      %v327 = vld [vmem:[%s5] sm:$0xf]
      %329 = vset.pattern.permute.xlu0 0
      %330 = vperm.xlu0 %329, %v327
      %v331 = vpop.permute.xlu0 %330
      %vm333 = vcmask 31744
      %v335 = vsel %vm333, %v321, 0
      %vm337 = vcmask 1041408
      %v339 = vsel %vm337, %v325, 0
      %v342 = vsel %vm337, %v326, 0
      %344 = vmatprep.subr.bf16.mxu0 0
      %345 = vmatpush1.bf16.msra.mxu0 0
      %346 = vmatprep.subr.bf16.mxu0 0
      %347 = vmatpush1.bf16.msra.mxu0 0
      %348 = vmatprep.subr.bf16.mxu0 0
      %349 = vmatpush1.bf16.msra.mxu0 0
      %350 = vmatprep.subr.bf16.mxu0 0
      %351 = vmatpush1.bf16.msra.mxu0 0
      %352 = vmatprep.subr.bf16.mxu0 0
      %353 = vmatpush1.bf16.msra.mxu0 0
      %354 = vmatprep.subr.bf16.mxu0 0
      %355 = vmatpush1.bf16.msra.mxu0 0
      %356 = vmatprep.subr.bf16.mxu0 0
      %357 = vmatpush1.bf16.msra.mxu0 0
      %358 = vmatprep.subr.bf16.mxu0 %v342
      %359 = vmatpush1.bf16.msra.mxu0 %v339
      %360 = vmatprep.subr.bf16.mxu0 0
      %361 = vmatpush2.bf16.msra.mxu0 0
      %362 = vmatprep.subr.bf16.mxu0 0
      %363 = vmatpush2.bf16.msra.mxu0 0
      %364 = vmatprep.subr.bf16.mxu0 0
      %365 = vmatpush2.bf16.msra.mxu0 0
      %366 = vmatprep.subr.bf16.mxu0 0
      %367 = vmatpush2.bf16.msra.mxu0 0
      %368 = vmatprep.subr.bf16.mxu0 0
      %369 = vmatpush2.bf16.msra.mxu0 0
      %370 = vmatprep.subr.bf16.mxu0 0
      %371 = vmatpush2.bf16.msra.mxu0 0
      %372 = vmatprep.subr.bf16.mxu0 0
      %373 = vmatpush2.bf16.msra.mxu0 0
      %374 = vmatprep.subr.bf16.mxu0 0
      %375 = vmatpush2.bf16.msra.mxu0 0
      %376 = vmatprep.mubr.bf16.mxu0 0
      %377 = vmatmul.mubr.bf16.gmra.mxu0 %v335
      %v378 = vpop.f32.mrf.mxu0
      %v379 = vadd.f32 %v331, %v378
      %v380 = vpop.f32.mrf.mxu0
      %v381 = vadd.f32 %v331, %v380
      %v382 = vpop.f32.mrf.mxu0
      %v383 = vpop.f32.mrf.mxu0
      %384 = vdwg.mxu0
      %v385 = vld [vmem:[%s6] sm:$0xf]
      %v386 = vmul.f32 %v311, %v385
      %388 = vset.pattern.permute.xlu0 0
      %389 = vperm.xlu0 %388, %v386
      %v390 = vpop.permute.xlu0 %389
      %v392 = vadd.f32 %v379, %v390
      %v393 = vadd.f32 %v381, %v390
      %v394 = vtanh.pop %v392
      %v395 = vtanh.pop %v393
      %v397 = vcombine.high %v319, %v319
      %v399 = vsub.f32 %v394, %v319
      %v400 = vsub.f32 %v395, %v397
      %v401 = vmul.f32 %v399, %v399
      %v402 = vmul.f32 %v400, %v400
      %vm403 = vcmask 1043456
      %v404 = vsel %vm403, %v401, 0.0
      %v405 = vrot.slane %v404, 4
      %v406 = vadd.f32 %v404, %v405
      %v407 = vrot.slane %v406, 2
      %v408 = vadd.f32 %v406, %v407
      %v409 = vrot.slane %v408, 1
      %v410 = vadd.f32 %v408, %v409
      %v411 = vsel %vm403, %v402, 0.0
      %v412 = vrot.slane %v411, 4
      %v413 = vadd.f32 %v411, %v412
      %v414 = vrot.slane %v413, 2
      %v415 = vadd.f32 %v413, %v414
      %v416 = vrot.slane %v415, 1
      %v417 = vadd.f32 %v415, %v416
      %v418 = vadd.f32 %v410, 0.0
      %v419 = vadd.f32 %v418, %v417
      %420 = vst [vmem:[%s294] sm:$0x1] %v419
      %p421 = scmp.lt.s32.totalorder %s24, 1
      %s422 = scalar_select %p421, %s24, 1
      %s423 = scalar_lea.vmem %s7, %s422
      // Predicated region
      $region45: #{bbdm_forward_loss.1} parent=43 // pred_check
        %p424 = pneg %p183
      $region46: #{bbdm_forward_loss.1} parent=43 // pred_check_branch
        %426 = sbr.rel (%p424) target = $region48
      $region47: #{bbdm_forward_loss.1} parent=43 // pred_region
        _
      $region48: #{bbdm_forward_loss.1} parent=43 // pred_fallthru
        _
    $region44: #{bbdm_forward_loss.1} parent=5 // pred_fallthru
      _
    %p427 = scmp.le.s32.totalorder 2, %s19
    // Predicated region
    $region49: #{bbdm_forward_loss.1} parent=5 // pred_check
      %p428 = pneg %p427
    $region50: #{bbdm_forward_loss.1} parent=5 // pred_check_branch
      %430 = sbr.rel (%p428) target = $region52
    $region51: #{bbdm_forward_loss.1} parent=5 // pred_region
      %s431 = ssub.s32 %s19, 2
      // Predicated region
      $region53: #{bbdm_forward_loss.1} parent=51 // pred_check
        %p432 = pneg %p189
      $region54: #{bbdm_forward_loss.1} parent=51 // pred_check_branch
        %434 = sbr.rel (%p432) target = $region56
      $region55: #{bbdm_forward_loss.1} parent=51 // pred_region
        %p435 = scmp.lt.s32.totalorder %s25, 1
        %s436 = scalar_select %p435, %s25, 1
        %s437 = scalar_lea.vmem %s7, %s436
      $region56: #{bbdm_forward_loss.1} parent=51 // pred_fallthru
        _
    $region52: #{bbdm_forward_loss.1} parent=5 // pred_fallthru
      _
  $region6: #{bbdm_forward_loss.1} parent=0 // loop_footer
    %s23 = sadd.s32 1, %s19
  $region7: #{bbdm_forward_loss.1} parent=0 // loop_footer_branch
    %18 = sbr.rel target = $region3
  $region8: #{bbdm_forward_loss.1} parent=0 // loop_exit
    _

</llo_original>
